<compile_context>
chip_gen: v7x
topology: tpu7x:2x2x1
jax: 0.10.0
libtpu: 0.0.40
codegen_flags: <defaults>
</compile_context>

<pallas_src>
import functools

import jax
import jax.numpy as jnp
from jax.experimental import pallas as pl
from jax.experimental.pallas import tpu as pltpu


def _bn_local_kernel(x_ref, w_ref, b_ref, o_ref, *, eps: float):
    # x_ref: (Bg, tC, L) tile -- one virtual-batch group x one channel tile.
    Bg, tC, L = x_ref.shape
    inv_n = 1.0 / float(Bg * L)

    # Pass 1: per-channel mean over (batch-in-group, length).
    x = x_ref[...].astype(jnp.float32)
    mean = jnp.sum(x, axis=(0, 2), keepdims=True) * inv_n            # (1, tC, 1)

    # Pass 2: centered (population) variance; re-read the VMEM tile instead of
    # keeping a full-tile centered temporary live.
    d = x_ref[...].astype(jnp.float32) - mean
    var = jnp.sum(d * d, axis=(0, 2), keepdims=True) * inv_n         # (1, tC, 1)

    # Fold normalization + affine into a single per-channel scale/shift.
    w = w_ref[...][None, :, :]                                       # (1, tC, 1)
    b = b_ref[...][None, :, :]                                       # (1, tC, 1)
    scale = w * jax.lax.rsqrt(var + eps)                             # EUP rsqrt
    shift = b - mean * scale

    # Pass 3: one mul + one add per element, lane-dense store in output dtype.
    o_ref[...] = (x_ref[...].astype(jnp.float32) * scale + shift).astype(o_ref.dtype)


def _pick_channel_tile(C: int, Bg: int, L: int, itemsize: int,
                       budget_bytes: int) -> int:
    """Largest channel tile that (a) divides C, (b) satisfies the TPU sublane rule
    (multiple of 8 or equal to C), and (c) keeps one x block under the VMEM budget.
    Falls back to the smallest legal tile if nothing fits."""
    cands = [d for d in range(C, 0, -1)
             if C % d == 0 and (d % 8 == 0 or d == C)]
    for d in cands:
        if Bg * d * L * itemsize <= budget_bytes:
            return d
    return cands[-1]


def batch_norm_local(x: jax.Array,
                     weight: jax.Array,
                     bias: jax.Array,
                     *,
                     virtual_bs: int = 8,
                     eps: float = 1e-5,
                     channel_tile: int | None = None) -> jax.Array:
    """Pallas implementation of BatchNormLocal.forward (affine=True)."""
    B, C, L = x.shape
    G = -(-B // virtual_bs)          # ceil(B / virtual_bs)
    assert B % G == 0, "PyTorch .view() would fail for this (B, virtual_bs)"
    Bg = B // G

    # ~3 MiB per x block => double-buffered in + out ≈ 4x block ≈ 12 MiB (+ tiny
    # params), comfortably inside v5e's 16 MiB scoped default, v6e's 32 MiB, and
    # v7x's 32 MiB scoped / 64 MiB physical.
    budget = 3 * 1024 * 1024
    tC = channel_tile if channel_tile is not None else _pick_channel_tile(
        C, Bg, L, x.dtype.itemsize, budget)
    assert C % tC == 0 and (tC % 8 == 0 or tC == C)

    # Params with channels on sublanes: (C, 1) arrays tiled as (tC, 1) blocks.
    w2 = weight.reshape(C, 1).astype(jnp.float32)
    b2 = bias.reshape(C, 1).astype(jnp.float32)

    kernel = functools.partial(_bn_local_kernel, eps=float(eps))

    return pl.pallas_call(
        kernel,
        out_shape=jax.ShapeDtypeStruct((B, C, L), x.dtype),
        grid_spec=pltpu.PrefetchScalarGridSpec(
            num_scalar_prefetch=0,
            grid=(G, C // tC),
            in_specs=[
                # x: one group x one channel tile per step; L kept whole (lanes).
                pl.BlockSpec((Bg, tC, L), lambda g, c: (g, c, 0)),
                pl.BlockSpec((tC, 1), lambda g, c: (c, 0)),          # weight
                pl.BlockSpec((tC, 1), lambda g, c: (c, 0)),          # bias
            ],
            out_specs=pl.BlockSpec((Bg, tC, L), lambda g, c: (g, c, 0)),
        ),
        compiler_params=pltpu.CompilerParams(
            dimension_semantics=("parallel", "parallel"),
            vmem_limit_bytes=32 * 1024 * 1024,
        ),
    )(x, w2, b2)


def _reference(x, weight, bias, virtual_bs=8, eps=1e-5):
    B, C, L = x.shape
    G = -(-B // virtual_bs)
    xg = x.reshape(G, B // G, C, L).astype(jnp.float32)
    mean = xg.mean(axis=(1, 3), keepdims=True)
    var = ((xg - mean) ** 2).mean(axis=(1, 3), keepdims=True)
    y = (xg - mean) / jnp.sqrt(var + eps)
    y = y * weight[None, None, :, None] + bias[None, None, :, None]
    return y.reshape(B, C, L).astype(x.dtype)


if __name__ == "__main__":
    key = jax.random.PRNGKey(0)

    # Test 1: toy shape matching the module defaults (virtual_bs=8 -> G=2 groups).
    B, C, L = 16, 8, 128
    k0, k1, k2 = jax.random.split(key, 3)
    x = jax.random.normal(k0, (B, C, L), dtype=jnp.float32)
    weight = jnp.ones((C,), dtype=jnp.float32)
    bias = jnp.zeros((C,), dtype=jnp.float32)

    out = batch_norm_local(x, weight, bias, virtual_bs=8, eps=1e-5)
    out = jax.block_until_ready(out)
    ref = _reference(x, weight, bias, virtual_bs=8, eps=1e-5)
    assert out.shape == (B, C, L)
    assert jnp.allclose(out, ref, atol=1e-5, rtol=1e-5)

    # Test 2: non-trivial affine + forced channel tiling (exercises the 2-D grid).
    C2 = 16
    x2 = jax.random.normal(k1, (B, C2, L), dtype=jnp.float32) * 2.0 + 0.5
    w2 = jax.random.normal(k2, (C2,), dtype=jnp.float32)
    b2 = jnp.linspace(-1.0, 1.0, C2, dtype=jnp.float32)

    out2 = batch_norm_local(x2, w2, b2, virtual_bs=8, eps=1e-5, channel_tile=8)
    out2 = jax.block_until_ready(out2)
    ref2 = _reference(x2, w2, b2, virtual_bs=8, eps=1e-5)
    assert jnp.allclose(out2, ref2, atol=1e-5, rtol=1e-5)

    print("KERNEL_OK")
</pallas_src>

<mosaic_0001>
module attributes {stable_mosaic.version = 11 : i64} {
  func.func @_bn_local_kernel(%arg0: i32, %arg1: i32, %arg2: memref<8x8x128xf32, #tpu.memory_space<vmem>>, %arg3: memref<8x1xf32, #tpu.memory_space<vmem>>, %arg4: memref<8x1xf32, #tpu.memory_space<vmem>>, %arg5: memref<8x8x128xf32, #tpu.memory_space<vmem>>) attributes {dimension_semantics = [#tpu.dimension_semantics<parallel>, #tpu.dimension_semantics<parallel>], iteration_bounds = array<i64: 2, 1>, scalar_prefetch = 0 : i64, scratch_operands = 0 : i64, tpu.core_type = #tpu.core_type<tc>, window_params = [{transform_indices = @transform_0, window_bounds = array<i64: 8, 8, 128>}, {transform_indices = @transform_1, window_bounds = array<i64: 8, 1>}, {transform_indices = @transform_2, window_bounds = array<i64: 8, 1>}, {transform_indices = @transform_3, window_bounds = array<i64: 8, 8, 128>}]} {
    %c0 = arith.constant 0 : index
    %c0_0 = arith.constant 0 : index
    %c0_1 = arith.constant 0 : index
    %0 = vector.load %arg2[%c0, %c0_0, %c0_1] : memref<8x8x128xf32, #tpu.memory_space<vmem>>, vector<8x8x128xf32>
    %cst = arith.constant dense<0.000000e+00> : vector<8xf32>
    %1 = vector.multi_reduction <add>, %0, %cst [0, 2] : vector<8x8x128xf32> to vector<8xf32>
    %2 = vector.shape_cast %1 : vector<8xf32> to vector<1x8x1xf32>
    %cst_2 = arith.constant 9.765625E-4 : f32
    %3 = vector.broadcast %cst_2 : f32 to vector<1x8x1xf32>
    %4 = arith.mulf %2, %3 : vector<1x8x1xf32>
    %c0_3 = arith.constant 0 : index
    %c0_4 = arith.constant 0 : index
    %c0_5 = arith.constant 0 : index
    %5 = vector.load %arg2[%c0_3, %c0_4, %c0_5] : memref<8x8x128xf32, #tpu.memory_space<vmem>>, vector<8x8x128xf32>
    %6 = vector.broadcast %4 : vector<1x8x1xf32> to vector<8x8x128xf32>
    %7 = arith.subf %5, %6 : vector<8x8x128xf32>
    %8 = arith.mulf %7, %7 : vector<8x8x128xf32>
    %cst_6 = arith.constant dense<0.000000e+00> : vector<8xf32>
    %9 = vector.multi_reduction <add>, %8, %cst_6 [0, 2] : vector<8x8x128xf32> to vector<8xf32>
    %10 = vector.shape_cast %9 : vector<8xf32> to vector<1x8x1xf32>
    %cst_7 = arith.constant 9.765625E-4 : f32
    %11 = vector.broadcast %cst_7 : f32 to vector<1x8x1xf32>
    %12 = arith.mulf %10, %11 : vector<1x8x1xf32>
    %c0_8 = arith.constant 0 : index
    %c0_9 = arith.constant 0 : index
    %13 = vector.load %arg3[%c0_8, %c0_9] : memref<8x1xf32, #tpu.memory_space<vmem>>, vector<8x1xf32>
    %14 = vector.shape_cast %13 : vector<8x1xf32> to vector<1x8x1xf32>
    %c0_10 = arith.constant 0 : index
    %c0_11 = arith.constant 0 : index
    %15 = vector.load %arg4[%c0_10, %c0_11] : memref<8x1xf32, #tpu.memory_space<vmem>>, vector<8x1xf32>
    %16 = vector.shape_cast %15 : vector<8x1xf32> to vector<1x8x1xf32>
    %cst_12 = arith.constant 9.99999974E-6 : f32
    %17 = vector.broadcast %cst_12 : f32 to vector<1x8x1xf32>
    %18 = arith.addf %12, %17 : vector<1x8x1xf32>
    %19 = math.rsqrt %18 : vector<1x8x1xf32>
    %20 = arith.mulf %14, %19 : vector<1x8x1xf32>
    %21 = arith.mulf %4, %20 : vector<1x8x1xf32>
    %22 = arith.subf %16, %21 : vector<1x8x1xf32>
    %c0_13 = arith.constant 0 : index
    %c0_14 = arith.constant 0 : index
    %c0_15 = arith.constant 0 : index
    %23 = vector.load %arg2[%c0_13, %c0_14, %c0_15] : memref<8x8x128xf32, #tpu.memory_space<vmem>>, vector<8x8x128xf32>
    %24 = vector.broadcast %20 : vector<1x8x1xf32> to vector<8x8x128xf32>
    %25 = arith.mulf %23, %24 : vector<8x8x128xf32>
    %26 = vector.broadcast %22 : vector<1x8x1xf32> to vector<8x8x128xf32>
    %27 = arith.addf %25, %26 : vector<8x8x128xf32>
    %c0_16 = arith.constant 0 : index
    %c0_17 = arith.constant 0 : index
    %c0_18 = arith.constant 0 : index
    %28 = vector.load %arg5[%c0_16, %c0_17, %c0_18] : memref<8x8x128xf32, #tpu.memory_space<vmem>>, vector<8x8x128xf32>
    tpu.vector_store %arg5[%c0_16, %c0_17, %c0_18], %27 {strides = array<i32>} : memref<8x8x128xf32, #tpu.memory_space<vmem>>, vector<8x8x128xf32>,
    return
  }
  func.func @transform_0(%arg0: i32, %arg1: i32) -> (i32, i32, i32) {
    %c0_i32 = arith.constant 0 : i32
    %c0_i32_0 = arith.constant 0 : i32
    return %arg0, %arg1, %c0_i32 : i32, i32, i32
  }
  func.func @transform_1(%arg0: i32, %arg1: i32) -> (i32, i32) {
    %c0_i32 = arith.constant 0 : i32
    %c0_i32_0 = arith.constant 0 : i32
    return %arg1, %c0_i32 : i32, i32
  }
  func.func @transform_2(%arg0: i32, %arg1: i32) -> (i32, i32) {
    %c0_i32 = arith.constant 0 : i32
    %c0_i32_0 = arith.constant 0 : i32
    return %arg1, %c0_i32 : i32, i32
  }
  func.func @transform_3(%arg0: i32, %arg1: i32) -> (i32, i32, i32) {
    %c0_i32 = arith.constant 0 : i32
    %c0_i32_0 = arith.constant 0 : i32
    return %arg0, %arg1, %c0_i32 : i32, i32, i32
  }
}

</mosaic_0001>

<llo_original>
// kernel: tpu_custom_call.1
$region0: #{tpu_custom_call.1}
  #allocation0 [shape = 'u32[]', space=smem, size = 0x4, offset = 0x4, fixed_abs, tag = 'smem constant byte address 0x4 - core index']
  #allocation1 [shape = 'u32[144,128]{1,0:T(1,128)}', space=vmem, size = 0x12000, scoped, tag = 'internal scratch']
  %s0 = inlined_call_operand.hbm [shape: f32[16,8,128], index: 0, kind: input, shape index: {}]
  %s1 = inlined_call_operand.vmem [shape: f32[8,1], index: 1, kind: input, shape index: {}]
  %s2 = inlined_call_operand.vmem [shape: f32[8,1], index: 2, kind: input, shape index: {}]
  %s3 = inlined_call_operand.hbm [shape: f32[16,8,128], index: 3, kind: output, shape index: {}]
  %s4 = sld [smem:[#allocation0]]
  $region49: #{tpu_custom_call.1} parent=0
    _
  %s6 = ssub.s32 1, %s4
  %s7 = scalar_select 0, %s6, %s4
  $region1: #{tpu_custom_call.1} parent=0
    #allocation2 [shape = 'u8[65536]{0}', space=vmem, size = 0x10000, scoped, tag = 'input window, operand 0']
    #allocation3 [shape = 's32[2]{0}', space=sflag, size = 0x8, scoped, tag = 'scoped memory for tpu_custom_call.1']
    #allocation4 [shape = 's32[2]{0}', space=sflag, size = 0x8, scoped, tag = 'scoped memory for tpu_custom_call.1']
    #allocation5 [shape = 'u8[65536]{0}', space=vmem, size = 0x10000, scoped, tag = 'output window, operand 0']
    %8 = vsyncpa [#allocation3], 0
    %s9 = scalar_lea.sflag [#allocation3], 1
    %10 = vsyncpa %s9, 0
    %11 = vsyncpa [#allocation4], 0
    %s12 = scalar_lea.sflag [#allocation4], 1
    %13 = vsyncpa %s12, 0
    loop: start=0, step=1, limit=4
    $region2: #{tpu_custom_call.1} parent=1 // loop_pre_header
      _
    $region3: #{tpu_custom_call.1} parent=1 // loop_header
      %s15 = sphi 0, %s19
      %p16 = scmp.ge.s32.totalorder %s15, 4
      %s22 = sphi 0, %s34
      %s23 = sphi 0, %s30
      %s24 = sphi 0, %s22
      %s25 = sphi 0, %s23
      %s26 = sphi 0, %s24
      %s27 = sphi 0, %s25
      %s39 = sphi 0, %s41
      %s42 = sphi 0, %s39
      %s43 = sphi 0, %s42
      %s59 = sphi 0, %s43
      %s65 = sphi 0, %s67
      %s68 = sphi 0, %s65
      %s69 = sphi 0, %s68
      %s85 = sphi 0, %s69
      %s91 = sphi 0, %s93
      %s94 = sphi 0, %s91
      %s95 = sphi 0, %s94
      %s111 = sphi 0, %s95
      %s119 = sphi 0, %s121
      %s122 = sphi 0, %s119
      %s123 = sphi 0, %s122
      %s139 = sphi 0, %s123
    $region4: #{tpu_custom_call.1} parent=1 // loop_header_branch
      %18 = sbr.rel (%p16) target = $region8
    $region5: #{tpu_custom_call.1} parent=1 // loop_body
      %s20 = ssub.s32 %s15, 1
      %s21 = ssub.s32 %s15, 2
      %s28 = sadd.s32 1, %s23
      %p29 = scmp.ge.s32.totalorder %s28, 1
      %s30 = scalar_select %p29, 0, %s28
      %s31 = sadd.s32 1, %s22
      %s32 = scalar_select %p29, %s31, %s22
      %p33 = scmp.ge.s32.totalorder %s32, 2
      %s34 = scalar_select %p33, 0, %s32
      %s35 = ssub.s32 %s22, %s34
      %s36 = ssub.s32 %s23, %s30
      %s37 = sor.u32 %s35, %s36
      %p38 = scmp.eq.s32.totalorder %s37, 0
      %s40 = sadd.s32 %s39, 1
      %s41 = scalar_select %p38, %s39, %s40
      %p44 = pneg %p38
      %p45 = scmp.eq.s32.totalorder %s15, 1
      %p46 = por %p44, %p45
      %p47 = scmp.ne.s32.totalorder %s39, %s42
      %p48 = scmp.eq.s32.totalorder %s15, 0
      %p49 = por %p47, %p48
      %p50 = scmp.ne.s32.totalorder %s39, %s42
      %p51 = scmp.eq.s32.totalorder %s20, 1
      %p52 = por %p50, %p51
      %p53 = scmp.ne.s32.totalorder %s42, %s43
      %p54 = scmp.eq.s32.totalorder %s20, 0
      %p55 = por %p53, %p54
      %p56 = scmp.ne.s32.totalorder %s42, %s43
      %p57 = scmp.eq.s32.totalorder %s21, 1
      %p58 = por %p56, %p57
      %p60 = scmp.ne.s32.totalorder %s43, %s59
      %p61 = scmp.eq.s32.totalorder %s21, 0
      %p62 = por %p60, %p61
      %s63 = ssub.s32 %s23, %s30
      %p64 = scmp.eq.s32.totalorder %s63, 0
      %s66 = sadd.s32 %s65, 1
      %s67 = scalar_select %p64, %s65, %s66
      %p70 = pneg %p64
      %p71 = scmp.eq.s32.totalorder %s15, 1
      %p72 = por %p70, %p71
      %p73 = scmp.ne.s32.totalorder %s65, %s68
      %p74 = scmp.eq.s32.totalorder %s15, 0
      %p75 = por %p73, %p74
      %p76 = scmp.ne.s32.totalorder %s65, %s68
      %p77 = scmp.eq.s32.totalorder %s20, 1
      %p78 = por %p76, %p77
      %p79 = scmp.ne.s32.totalorder %s68, %s69
      %p80 = scmp.eq.s32.totalorder %s20, 0
      %p81 = por %p79, %p80
      %p82 = scmp.ne.s32.totalorder %s68, %s69
      %p83 = scmp.eq.s32.totalorder %s21, 1
      %p84 = por %p82, %p83
      %p86 = scmp.ne.s32.totalorder %s69, %s85
      %p87 = scmp.eq.s32.totalorder %s21, 0
      %p88 = por %p86, %p87
      %s89 = ssub.s32 %s23, %s30
      %p90 = scmp.eq.s32.totalorder %s89, 0
      %s92 = sadd.s32 %s91, 1
      %s93 = scalar_select %p90, %s91, %s92
      %p96 = pneg %p90
      %p97 = scmp.eq.s32.totalorder %s15, 1
      %p98 = por %p96, %p97
      %p99 = scmp.ne.s32.totalorder %s91, %s94
      %p100 = scmp.eq.s32.totalorder %s15, 0
      %p101 = por %p99, %p100
      %p102 = scmp.ne.s32.totalorder %s91, %s94
      %p103 = scmp.eq.s32.totalorder %s20, 1
      %p104 = por %p102, %p103
      %p105 = scmp.ne.s32.totalorder %s94, %s95
      %p106 = scmp.eq.s32.totalorder %s20, 0
      %p107 = por %p105, %p106
      %p108 = scmp.ne.s32.totalorder %s94, %s95
      %p109 = scmp.eq.s32.totalorder %s21, 1
      %p110 = por %p108, %p109
      %p112 = scmp.ne.s32.totalorder %s95, %s111
      %p113 = scmp.eq.s32.totalorder %s21, 0
      %p114 = por %p112, %p113
      %s115 = ssub.s32 %s22, %s34
      %s116 = ssub.s32 %s23, %s30
      %s117 = sor.u32 %s115, %s116
      %p118 = scmp.eq.s32.totalorder %s117, 0
      %s120 = sadd.s32 %s119, 1
      %s121 = scalar_select %p118, %s119, %s120
      %p124 = pneg %p118
      %p125 = scmp.eq.s32.totalorder %s15, 1
      %p126 = por %p124, %p125
      %p127 = scmp.ne.s32.totalorder %s119, %s122
      %p128 = scmp.eq.s32.totalorder %s15, 0
      %p129 = por %p127, %p128
      %p130 = scmp.ne.s32.totalorder %s119, %s122
      %p131 = scmp.eq.s32.totalorder %s20, 1
      %p132 = por %p130, %p131
      %p133 = scmp.ne.s32.totalorder %s122, %s123
      %p134 = scmp.eq.s32.totalorder %s20, 0
      %p135 = por %p133, %p134
      %p136 = scmp.ne.s32.totalorder %s122, %s123
      %p137 = scmp.eq.s32.totalorder %s21, 1
      %p138 = por %p136, %p137
      %p140 = scmp.ne.s32.totalorder %s123, %s139
      %p141 = scmp.eq.s32.totalorder %s21, 0
      %p142 = por %p140, %p141
      %p143 = scmp.le.s32.totalorder 1, %s15
      %p144 = scmp.lt.s32.totalorder %s15, 3
      %p145 = pnand %p143, %p144
      %p146 = pneg %p145
      // Predicated region
      $region9: #{tpu_custom_call.1} parent=5 // pred_check
        _
      $region10: #{tpu_custom_call.1} parent=5 // pred_check_branch
        %148 = sbr.rel (%p145) target = $region12
      $region11: #{tpu_custom_call.1} parent=5 // pred_region
        %s149 = ssub.s32 %s15, 1
        // Predicated region
        $region13: #{tpu_custom_call.1} parent=11 // pred_check
          %p150 = pneg %p81
        $region14: #{tpu_custom_call.1} parent=11 // pred_check_branch
          %152 = sbr.rel (%p150) target = $region16
        $region15: #{tpu_custom_call.1} parent=11 // pred_region
          %p153 = scmp.lt.s32.totalorder %s25, 0
          %s154 = scalar_select %p153, %s25, 0
          %s155 = smul.addr %s154, 8
          %s156 = scalar_lea.vmem %s1, %s155
        $region16: #{tpu_custom_call.1} parent=11 // pred_fallthru
          _
        // Predicated region
        $region17: #{tpu_custom_call.1} parent=11 // pred_check
          %p157 = pneg %p107
        $region18: #{tpu_custom_call.1} parent=11 // pred_check_branch
          %159 = sbr.rel (%p157) target = $region20
        $region19: #{tpu_custom_call.1} parent=11 // pred_region
          %p160 = scmp.lt.s32.totalorder %s25, 0
          %s161 = scalar_select %p160, %s25, 0
          %s162 = smul.addr %s161, 8
          %s163 = scalar_lea.vmem %s2, %s162
        $region20: #{tpu_custom_call.1} parent=11 // pred_fallthru
          _
      $region12: #{tpu_custom_call.1} parent=5 // pred_fallthru
        _
      %p164 = scmp.lt.s32.totalorder %s15, 2
      // Predicated region
      $region21: #{tpu_custom_call.1} parent=5 // pred_check
        %p165 = pneg %p164
      $region22: #{tpu_custom_call.1} parent=5 // pred_check_branch
        %167 = sbr.rel (%p165) target = $region24
      $region23: #{tpu_custom_call.1} parent=5 // pred_region
        // Predicated region
        $region25: #{tpu_custom_call.1} parent=23 // pred_check
          %p168 = pneg %p49
        $region26: #{tpu_custom_call.1} parent=23 // pred_check_branch
          %170 = sbr.rel (%p168) target = $region28
        $region27: #{tpu_custom_call.1} parent=23 // pred_region
          %s171 = sand.u32 %s39, 1
          %s172 = scalar_lea.sflag [#allocation3], %s171
          %s173 = sand.u32 %s39, 1
          %s174 = smul.addr %s173, 64
          %s175 = scalar_lea.vmem [#allocation2], %s174
          %s176 = smul.u32 8, %s22
          %s178 = ssub.s32 1024, 1024
          %179 = vsyncadd %s172, %s178
          %s180 = sadd.s32 %s23, %s176
          %s181 = smul.addr %s180, 128
          %s182 = scalar_lea.hbm %s0, %s181
          %s183 = sshll.u32 %s175, 4
          %s184 = int_to_ptr.vmem [resolvable:$true] %s183
          %189 = dma.hbm_to_vmem [thread:$0]  %s182, 1024, %s184, %s172, 128, 128, 8
        $region28: #{tpu_custom_call.1} parent=23 // pred_fallthru
          _
      $region24: #{tpu_custom_call.1} parent=5 // pred_fallthru
        _
      %p190 = scmp.le.s32.totalorder 1, %s15
      %p191 = scmp.lt.s32.totalorder %s15, 3
      %p192 = pnand %p190, %p191
      %p193 = pneg %p192
      // Predicated region
      $region29: #{tpu_custom_call.1} parent=5 // pred_check
        _
      $region30: #{tpu_custom_call.1} parent=5 // pred_check_branch
        %195 = sbr.rel (%p192) target = $region32
      $region31: #{tpu_custom_call.1} parent=5 // pred_region
        %s196 = ssub.s32 %s15, 1
        %s197 = sand.u32 %s42, 1
        %s198 = scalar_lea.sflag [#allocation3], %s197
        %s199 = sand.u32 %s42, 1
        %s200 = smul.addr %s199, 64
        %s201 = scalar_lea.vmem [#allocation2], %s200
        // Predicated region
        $region33: #{tpu_custom_call.1} parent=31 // pred_check
          %p202 = pneg %p55
        $region34: #{tpu_custom_call.1} parent=31 // pred_check_branch
          %204 = sbr.rel (%p202) target = $region36
        $region35: #{tpu_custom_call.1} parent=31 // pred_region
          %205 = dma.done %s198, 1024
        $region36: #{tpu_custom_call.1} parent=31 // pred_fallthru
          _
        %s206 = sand.u32 %s42, 1
        %s207 = scalar_lea.sflag [#allocation3], %s206
        %s208 = sand.u32 %s42, 1
        %s209 = smul.addr %s208, 64
        %s210 = scalar_lea.vmem [#allocation2], %s209
        %p211 = pneg %p55
        %p212 = pneg %p52
        %p213 = scmp.lt.s32.totalorder %s25, 0
        %s214 = scalar_select %p213, %s25, 0
        %s215 = smul.addr %s214, 8
        %s216 = scalar_lea.vmem %s1, %s215
        %p217 = pneg %p81
        %p218 = pneg %p78
        %p219 = scmp.lt.s32.totalorder %s25, 0
        %s220 = scalar_select %p219, %s25, 0
        %s221 = smul.addr %s220, 8
        %s222 = scalar_lea.vmem %s2, %s221
        %p223 = pneg %p107
        %p224 = pneg %p104
        %p225 = pneg %p135
        %p226 = pneg %p132
        %s227 = sand.u32 %s122, 1
        %s228 = scalar_lea.sflag [#allocation4], %s227
        %s229 = sand.u32 %s122, 1
        %s230 = smul.addr %s229, 64
        %s231 = scalar_lea.vmem [#allocation5], %s230
        %s232 = smul.u32 8, %s24
        %p233 = scmp.lt.s32.totalorder %s25, 0
        %s234 = scalar_select %p233, %s25, 0
        %s235 = smul.addr %s234, 8
        %s236 = scalar_lea.vmem %s1, %s235
        %p237 = scmp.lt.s32.totalorder %s25, 0
        %s238 = scalar_select %p237, %s25, 0
        %s239 = smul.addr %s238, 8
        %s240 = scalar_lea.vmem %s2, %s239
        %s241 = smul.u32 8, %s24
        %v242 = vld [vmem:[%s201] sm:$0xff]
        %v243 = vld [vmem:[%s201 + $0x8] sm:$0xff]
        %v244 = vld [vmem:[%s201 + $0x10] sm:$0xff]
        %v245 = vld [vmem:[%s201 + $0x18] sm:$0xff]
        %v246 = vld [vmem:[%s201 + $0x20] sm:$0xff]
        %v247 = vld [vmem:[%s201 + $0x28] sm:$0xff]
        %v248 = vld [vmem:[%s201 + $0x30] sm:$0xff]
        %v249 = vld [vmem:[%s201 + $0x38] sm:$0xff]
        %v250 = vadd.f32 %v242, %v243
        %v251 = vadd.f32 %v250, %v244
        %v252 = vadd.f32 %v251, %v245
        %v253 = vadd.f32 %v252, %v246
        %v254 = vadd.f32 %v253, %v247
        %v255 = vadd.f32 %v254, %v248
        %v256 = vadd.f32 %v255, %v249
        %257 = vadd.xlane.f32.xlu0 %v256
        %v258 = vpop.xlane.xlu0 %257
        %v259 = vmul.f32 %v258, 0.0009765625
        %v260 = vsub.f32 %v242, %v259
        %v261 = vsub.f32 %v243, %v259
        %v262 = vsub.f32 %v244, %v259
        %v263 = vsub.f32 %v245, %v259
        %v264 = vsub.f32 %v246, %v259
        %v265 = vsub.f32 %v247, %v259
        %v266 = vsub.f32 %v248, %v259
        %v267 = vsub.f32 %v249, %v259
        %v268 = vmul.f32 %v260, %v260
        %v269 = vmul.f32 %v261, %v261
        %v270 = vmul.f32 %v262, %v262
        %v271 = vmul.f32 %v263, %v263
        %v272 = vmul.f32 %v264, %v264
        %v273 = vmul.f32 %v265, %v265
        %v274 = vmul.f32 %v266, %v266
        %v275 = vmul.f32 %v267, %v267
        %v276 = vadd.f32 %v268, %v269
        %v277 = vadd.f32 %v276, %v270
        %v278 = vadd.f32 %v277, %v271
        %v279 = vadd.f32 %v278, %v272
        %v280 = vadd.f32 %v279, %v273
        %v281 = vadd.f32 %v280, %v274
        %v282 = vadd.f32 %v281, %v275
        %283 = vadd.xlane.f32.xlu0 %v282
        %v284 = vpop.xlane.xlu0 %283
        %v285 = vmul.f32 %v284, 0.0009765625
        %v286 = vld [vmem:[%s236] sm:$0xff]
        %v287 = vld [vmem:[%s240] sm:$0xff]
        %v288 = vadd.f32 %v285, 1e-05
        %v289 = vrsqrt.pop %v288
        %v290 = vmul.f32 %v286, %v289
        %v291 = vmul.f32 %v259, %v290
        %v292 = vsub.f32 %v287, %v291
        %294 = vset.pattern.permute.xlu0 0
        %295 = vperm.xlu0 %294, %v290
        %v296 = vpop.permute.xlu0 %295
        %v298 = vmul.f32 %v242, %v296
        %v299 = vmul.f32 %v243, %v296
        %v300 = vmul.f32 %v244, %v296
        %v301 = vmul.f32 %v245, %v296
        %v302 = vmul.f32 %v246, %v296
        %v303 = vmul.f32 %v247, %v296
        %v304 = vmul.f32 %v248, %v296
        %v305 = vmul.f32 %v249, %v296
        %307 = vset.pattern.permute.xlu0 0
        %308 = vperm.xlu0 %307, %v292
        %v309 = vpop.permute.xlu0 %308
        %v311 = vadd.f32 %v298, %v309
        %v312 = vadd.f32 %v299, %v309
        %v313 = vadd.f32 %v300, %v309
        %v314 = vadd.f32 %v301, %v309
        %v315 = vadd.f32 %v302, %v309
        %v316 = vadd.f32 %v303, %v309
        %v317 = vadd.f32 %v304, %v309
        %v318 = vadd.f32 %v305, %v309
        %319 = vst [vmem:[%s231] sm:$0xff] %v311
        %320 = vst [vmem:[%s231 + $0x8] sm:$0xff] %v312
        %321 = vst [vmem:[%s231 + $0x10] sm:$0xff] %v313
        %322 = vst [vmem:[%s231 + $0x18] sm:$0xff] %v314
        %323 = vst [vmem:[%s231 + $0x20] sm:$0xff] %v315
        %324 = vst [vmem:[%s231 + $0x28] sm:$0xff] %v316
        %325 = vst [vmem:[%s231 + $0x30] sm:$0xff] %v317
        %326 = vst [vmem:[%s231 + $0x38] sm:$0xff] %v318
        %s327 = sand.u32 %s122, 1
        %s328 = scalar_lea.sflag [#allocation4], %s327
        %s329 = sand.u32 %s122, 1
        %s330 = smul.addr %s329, 64
        %s331 = scalar_lea.vmem [#allocation5], %s330
        // Predicated region
        $region37: #{tpu_custom_call.1} parent=31 // pred_check
          %p332 = pneg %p132
        $region38: #{tpu_custom_call.1} parent=31 // pred_check_branch
          %334 = sbr.rel (%p332) target = $region40
        $region39: #{tpu_custom_call.1} parent=31 // pred_region
          %s335 = smul.u32 8, %s24
          %s337 = ssub.s32 1024, 1024
          %338 = vsyncadd %s328, %s337
          %s339 = sadd.s32 %s25, %s335
          %s340 = smul.addr %s339, 128
          %s341 = scalar_lea.hbm %s3, %s340
          %s342 = sshll.u32 %s331, 4
          %s343 = int_to_ptr.vmem [resolvable:$true] %s342
          %348 = dma.vmem_to_hbm [thread:$0]  %s343, 1024, %s341, %s328, 128, 128, 8
        $region40: #{tpu_custom_call.1} parent=31 // pred_fallthru
          _
      $region32: #{tpu_custom_call.1} parent=5 // pred_fallthru
        _
      %p349 = scmp.le.s32.totalorder 2, %s15
      // Predicated region
      $region41: #{tpu_custom_call.1} parent=5 // pred_check
        %p350 = pneg %p349
      $region42: #{tpu_custom_call.1} parent=5 // pred_check_branch
        %352 = sbr.rel (%p350) target = $region44
      $region43: #{tpu_custom_call.1} parent=5 // pred_region
        %s353 = ssub.s32 %s15, 2
        // Predicated region
        $region45: #{tpu_custom_call.1} parent=43 // pred_check
          %p354 = pneg %p138
        $region46: #{tpu_custom_call.1} parent=43 // pred_check_branch
          %356 = sbr.rel (%p354) target = $region48
        $region47: #{tpu_custom_call.1} parent=43 // pred_region
          %s357 = sand.u32 %s123, 1
          %s358 = scalar_lea.sflag [#allocation4], %s357
          %s359 = sand.u32 %s123, 1
          %s360 = smul.addr %s359, 64
          %s361 = scalar_lea.vmem [#allocation5], %s360
          %362 = dma.done %s358, 1024
        $region48: #{tpu_custom_call.1} parent=43 // pred_fallthru
          _
      $region44: #{tpu_custom_call.1} parent=5 // pred_fallthru
        _
    $region6: #{tpu_custom_call.1} parent=1 // loop_footer
      %s19 = sadd.s32 1, %s15
    $region7: #{tpu_custom_call.1} parent=1 // loop_footer_branch
      %14 = sbr.rel target = $region3
    $region8: #{tpu_custom_call.1} parent=1 // loop_exit
      _
    %363 = vsyncpa [#allocation3], 1
    %s364 = scalar_lea.sflag [#allocation3], 1
    %365 = vsyncpa %s364, 1
    %366 = vsyncpa [#allocation4], 1
    %s367 = scalar_lea.sflag [#allocation4], 1
    %368 = vsyncpa %s367, 1

</llo_original>
